<compile_context>
chip_gen: v5e
topology: v5e:2x2
jax: 0.10.0
libtpu: 0.0.40
codegen_flags: <defaults>
</compile_context>

<pallas_src>
import math

import jax
import jax.numpy as jnp
from jax.experimental import pallas as pl
from jax.experimental.pallas import tpu as pltpu


class BracketedSequence:
    """Minimal JAX-side mirror of the PyTorch helper class."""

    def __init__(self, x, first=None, nb=None):
        self.x = x
        self.first = 0 if first is None else first
        self.nb = x.shape[1] if nb is None else nb

    def slice(self):
        return self.x[:, self.first:self.first + self.nb]

    def complete(self):
        return self.first == 0 and self.nb == self.x.shape[1]


def _decoder_bottom_kernel(z_ref, w_ref, b_ref, y_ref, acc_ref):
    # z_ref: (TB, dim_in)  w_ref: (dim_in, TD)  b_ref: (1, TD)
    # y_ref: (TB, TT, TD)  acc_ref: (TB, TD) scratch in the OUTPUT dtype.
    #
    # The GEMM result only depends on the (B-tile, D-tile) grid position, so
    # compute it once when the innermost T axis is at 0 and reuse it (already
    # bias-added and cast) for every subsequent T tile of the same block.
    @pl.when(pl.program_id(2) == 0)
    def _():
        acc = jnp.dot(z_ref[...], w_ref[...], preferred_element_type=jnp.float32)
        acc_ref[...] = (acc + b_ref[...].astype(jnp.float32)).astype(acc_ref.dtype)

    tb, tt, td = y_ref.shape
    # expand(shape): broadcast the single "token" across the seq tile; no cast
    # needed here since the scratch already holds the output dtype.
    y_ref[...] = jnp.broadcast_to(acc_ref[...][:, None, :], (tb, tt, td))


def _floor_to(x, a):
    return max(a, (x // a) * a)


def _pick_tile(dim, cap, align):
    """Full dim if it fits under cap (always a legal block extent), else the
    largest `align`-multiple <= cap (partial edge tiles are masked by Pallas)."""
    if dim <= cap:
        return dim
    return _floor_to(cap, align)


def _choose_tiles(B, T, D, dim_in, in_itemsize, out_itemsize):
    budget = 24 << 20  # stay under the 32 MiB default scoped-VMEM limit
    # Cap TB / TD so the (double-buffered) resident z and w tiles stay small
    # even when dim_in is large.
    tb_cap = max(8, _floor_to((2 << 20) // max(1, dim_in * in_itemsize), 8))
    td_cap = max(128, _floor_to((6 << 20) // max(1, dim_in * in_itemsize), 128))
    TB = _pick_tile(B, min(256, tb_cap), 8)
    TD = _pick_tile(D, min(512, td_cap), 128)
    # Remaining budget goes to the (double-buffered) output slab: the kernel is
    # store-bound, so the bigger TT is, the fewer grid steps / DMA descriptors.
    fixed = (2 * (TB * dim_in + dim_in * TD + 8 * TD) * in_itemsize
             + TB * TD * out_itemsize)
    per_t = 2 * TB * TD * out_itemsize
    tt_cap = (budget - fixed) // per_t if budget > fixed else 8
    TT = _pick_tile(T, int(min(max(tt_cap, 8), 128)), 8)
    return TB, TT, TD


def decoder_bottom(z, w, b, shape, *, out_dtype=None):
    """Pallas forward of DecoderBottom.

    z:     (B, dim_in)
    w:     (dim_in, dim_out)   (== torch fc.weight.T)
    b:     (dim_out,)          (== torch fc.bias)
    shape: (B, T, dim_out)     target expand shape
    """
    B, T, D = shape
    dim_in = z.shape[1]
    assert z.shape[0] == B and w.shape == (dim_in, D) and b.shape == (D,)
    out_dtype = z.dtype if out_dtype is None else out_dtype

    b2 = b.reshape(1, D)

    in_itemsize = jnp.dtype(z.dtype).itemsize
    out_itemsize = jnp.dtype(out_dtype).itemsize
    TB, TT, TD = _choose_tiles(B, T, D, dim_in, in_itemsize, out_itemsize)

    grid = (pl.cdiv(B, TB), pl.cdiv(D, TD), pl.cdiv(T, TT))

    cost = pl.CostEstimate(
        flops=2 * B * dim_in * D,
        transcendentals=0,
        bytes_accessed=(B * dim_in + dim_in * D + D) * in_itemsize
        + B * T * D * out_itemsize,
    )

    y = pl.pallas_call(
        _decoder_bottom_kernel,
        out_shape=jax.ShapeDtypeStruct((B, T, D), out_dtype),
        grid_spec=pltpu.PrefetchScalarGridSpec(
            num_scalar_prefetch=0,
            grid=grid,
            in_specs=[
                # z block is constant over the D and T grid axes -> stays resident.
                pl.BlockSpec((TB, dim_in), lambda bi, di, ti: (bi, 0)),
                # w / bias blocks are constant over the B and T grid axes.
                pl.BlockSpec((dim_in, TD), lambda bi, di, ti: (0, di)),
                pl.BlockSpec((1, TD), lambda bi, di, ti: (0, di)),
            ],
            out_specs=pl.BlockSpec(
                (TB, TT, TD), lambda bi, di, ti: (bi, ti, di)
            ),
            # Scratch holds the bias-added, already-cast GEMM tile.
            scratch_shapes=[pltpu.VMEM((TB, TD), out_dtype)],
        ),
        compiler_params=pltpu.CompilerParams(
            dimension_semantics=("parallel", "parallel", "arbitrary"),
        ),
        cost_estimate=cost,
    )(z, w, b2)

    # TODO(synk): torch's .expand is a zero-copy stride-0 view; consumers that
    # can take a (B, dim_out) tensor should skip this T-broadcast
    # materialization entirely (saves T x HBM writeback).
    return BracketedSequence(y)


if __name__ == "__main__":
    # Small shapes implied by the forward: z (B, dim_in), shape (B, T, dim_out).
    B, T = 2, 8
    dim_in, dim_out = 32, 32

    key = jax.random.PRNGKey(0)
    kz, kw, kb = jax.random.split(key, 3)

    # Deterministic params, mimicking torch.nn.Linear default init
    # (U(-k, k), k = 1/sqrt(dim_in)).
    bound = 1.0 / math.sqrt(dim_in)
    w = jax.random.uniform(kw, (dim_in, dim_out), jnp.float32, -bound, bound)
    b = jax.random.uniform(kb, (dim_out,), jnp.float32, -bound, bound)
    z = jax.random.normal(kz, (B, dim_in), jnp.float32)

    shape = (B, T, dim_out)
    out = decoder_bottom(z, w, b, shape)
    y = jax.block_until_ready(out.x)

    # Pure-JAX reference of the PyTorch forward.
    y_ref = jnp.broadcast_to((z @ w + b)[:, None, :], shape)

    assert y.shape == shape
    assert out.complete()
    assert jnp.allclose(y, y_ref, atol=1e-5, rtol=1e-5)
    print("KERNEL_OK")
</pallas_src>

<mosaic_0001>
module attributes {stable_mosaic.version = 11 : i64} {
  func.func @_decoder_bottom_kernel(%arg0: i32, %arg1: i32, %arg2: i32, %arg3: memref<2x32xf32, #tpu.memory_space<vmem>>, %arg4: memref<32x32xf32, #tpu.memory_space<vmem>>, %arg5: memref<1x32xf32, #tpu.memory_space<vmem>>, %arg6: memref<2x8x32xf32, #tpu.memory_space<vmem>>, %arg7: memref<2x32xf32, #tpu.memory_space<vmem>>) attributes {dimension_semantics = [#tpu.dimension_semantics<parallel>, #tpu.dimension_semantics<parallel>, #tpu.dimension_semantics<arbitrary>], iteration_bounds = array<i64: 1, 1, 1>, scalar_prefetch = 0 : i64, scratch_operands = 1 : i64, tpu.core_type = #tpu.core_type<tc>, window_params = [{transform_indices = @transform_0, window_bounds = array<i64: 2, 32>}, {transform_indices = @transform_1, window_bounds = array<i64: 32, 32>}, {transform_indices = @transform_2, window_bounds = array<i64: 1, 32>}, {transform_indices = @transform_3, window_bounds = array<i64: 2, 8, 32>}]} {
    %c0_i32 = arith.constant 0 : i32
    %0 = arith.cmpi eq, %arg2, %c0_i32 : i32
    %1 = arith.extui %0 : i1 to i32
    %c0_i32_0 = arith.constant 0 : i32
    %2 = arith.cmpi ne, %1, %c0_i32_0 : i32
    scf.if %2 {
      %c0_5 = arith.constant 0 : index
      %c0_6 = arith.constant 0 : index
      %8 = vector.load %arg3[%c0_5, %c0_6] : memref<2x32xf32, #tpu.memory_space<vmem>>, vector<2x32xf32>
      %c0_7 = arith.constant 0 : index
      %c0_8 = arith.constant 0 : index
      %9 = vector.load %arg4[%c0_7, %c0_8] : memref<32x32xf32, #tpu.memory_space<vmem>>, vector<32x32xf32>
      %cst = arith.constant dense<0.000000e+00> : vector<2x32xf32>
      %10 = tpu.matmul %8, %9, %cst {dimension_numbers = #tpu.dot_dimension_numbers<[1], [0], [0], [1], [0, 0, 1, 1], [], []>} : vector<2x32xf32>, vector<32x32xf32>, vector<2x32xf32> -> vector<2x32xf32>
      %c0_9 = arith.constant 0 : index
      %c0_10 = arith.constant 0 : index
      %11 = vector.load %arg5[%c0_9, %c0_10] : memref<1x32xf32, #tpu.memory_space<vmem>>, vector<1x32xf32>
      %12 = vector.broadcast %11 : vector<1x32xf32> to vector<2x32xf32>
      %13 = arith.addf %10, %12 : vector<2x32xf32>
      %c0_11 = arith.constant 0 : index
      %c0_12 = arith.constant 0 : index
      %14 = vector.load %arg7[%c0_11, %c0_12] : memref<2x32xf32, #tpu.memory_space<vmem>>, vector<2x32xf32>
      tpu.vector_store %arg7[%c0_11, %c0_12], %13 {strides = array<i32>} : memref<2x32xf32, #tpu.memory_space<vmem>>, vector<2x32xf32>,
    } else {
    }
    %c0 = arith.constant 0 : index
    %c0_1 = arith.constant 0 : index
    %3 = vector.load %arg7[%c0, %c0_1] : memref<2x32xf32, #tpu.memory_space<vmem>>, vector<2x32xf32>
    %4 = vector.shape_cast %3 : vector<2x32xf32> to vector<2x1x32xf32>
    %5 = vector.shape_cast %4 : vector<2x1x32xf32> to vector<2x1x32xf32>
    %6 = vector.broadcast %5 : vector<2x1x32xf32> to vector<2x8x32xf32>
    %c0_2 = arith.constant 0 : index
    %c0_3 = arith.constant 0 : index
    %c0_4 = arith.constant 0 : index
    %7 = vector.load %arg6[%c0_2, %c0_3, %c0_4] : memref<2x8x32xf32, #tpu.memory_space<vmem>>, vector<2x8x32xf32>
    tpu.vector_store %arg6[%c0_2, %c0_3, %c0_4], %6 {strides = array<i32>} : memref<2x8x32xf32, #tpu.memory_space<vmem>>, vector<2x8x32xf32>,
    return
  }
  func.func @transform_0(%arg0: i32, %arg1: i32, %arg2: i32) -> (i32, i32) {
    %c0_i32 = arith.constant 0 : i32
    %c0_i32_0 = arith.constant 0 : i32
    return %arg0, %c0_i32 : i32, i32
  }
  func.func @transform_1(%arg0: i32, %arg1: i32, %arg2: i32) -> (i32, i32) {
    %c0_i32 = arith.constant 0 : i32
    %c0_i32_0 = arith.constant 0 : i32
    return %c0_i32, %arg1 : i32, i32
  }
  func.func @transform_2(%arg0: i32, %arg1: i32, %arg2: i32) -> (i32, i32) {
    %c0_i32 = arith.constant 0 : i32
    %c0_i32_0 = arith.constant 0 : i32
    return %c0_i32, %arg1 : i32, i32
  }
  func.func @transform_3(%arg0: i32, %arg1: i32, %arg2: i32) -> (i32, i32, i32) {
    %c0_i32 = arith.constant 0 : i32
    return %arg0, %arg2, %arg1 : i32, i32, i32
  }
}

</mosaic_0001>

<llo_original>
// kernel: tpu_custom_call.1
$region0: #{tpu_custom_call.1}
  #allocation0 [shape = 'u32[]', space=smem, size = 0x4, offset = 0x4, fixed_abs, tag = 'smem constant byte address 0x4 - core index']
  #allocation1 [shape = 'u32[72,128]{1,0:T(1,128)}', space=vmem, size = 0x9000, scoped, tag = 'internal scratch']
  #allocation2 [shape = 'f32[2,32]{1,0:T(2,128)}', space=vmem, size = 0x400, scoped, tag = 'scratch operand']
  %s0 = inlined_call_operand.hbm [shape: f32[2,32], index: 0, kind: input, shape index: {}]
  %s1 = inlined_call_operand.hbm [shape: f32[32,32], index: 1, kind: input, shape index: {}]
  %s2 = inlined_call_operand.vmem [shape: f32[1,32], index: 2, kind: input, shape index: {}]
  %s3 = inlined_call_operand.hbm [shape: f32[2,8,32], index: 3, kind: output, shape index: {}]
  %s4 = sld [smem:[#allocation0]]
  $region34: #{tpu_custom_call.1} parent=0
    _
  %s6 = ssub.s32 1, %s4
  %s7 = scalar_select 0, %s6, %s4
  $region1: #{tpu_custom_call.1} parent=0
    #allocation3 [shape = 'u8[1024]{0}', space=vmem, size = 0x400, scoped, tag = 'input window, operand 0, single buffered']
    #allocation4 [shape = 's32[1]{0}', space=sflag, size = 0x4, scoped, tag = 'scoped memory for tpu_custom_call.1']
    #allocation5 [shape = 's32[1]{0}', space=sflag, size = 0x4, scoped, tag = 'scoped memory for tpu_custom_call.1']
    #allocation6 [shape = 'u8[16384]{0}', space=vmem, size = 0x4000, scoped, tag = 'input window, operand 1, single buffered']
    #allocation7 [shape = 's32[1]{0}', space=sflag, size = 0x4, scoped, tag = 'scoped memory for tpu_custom_call.1']
    #allocation8 [shape = 'u8[8192]{0}', space=vmem, size = 0x2000, scoped, tag = 'output window, operand 0, single buffered']
    %8 = vsyncpa [#allocation4], 0
    %9 = vsyncpa [#allocation7], 0
    %10 = vsyncpa [#allocation5], 0
    // Predicated region
    $region2: #{tpu_custom_call.1} parent=1 // pred_check
      _
    $region3: #{tpu_custom_call.1} parent=1 // pred_check_branch
      %12 = sbr.rel (0) target = $region5
    $region4: #{tpu_custom_call.1} parent=1 // pred_region
      %14 = vsyncadd [#allocation4], 0
      %s16 = sshll.u32 %s0, 4
      %s17 = int_to_ptr.hbm [resolvable:$true] %s16
      %s18 = sshll.u32 [#allocation3], 4
      %s19 = int_to_ptr.vmem [resolvable:$true] %s18
      %21 = dma.hbm_to_vmem [thread:$0]  %s17, 32, %s19, [#allocation4]
    $region5: #{tpu_custom_call.1} parent=1 // pred_fallthru
      _
    // Predicated region
    $region6: #{tpu_custom_call.1} parent=1 // pred_check
      _
    $region7: #{tpu_custom_call.1} parent=1 // pred_check_branch
      %23 = sbr.rel (0) target = $region9
    $region8: #{tpu_custom_call.1} parent=1 // pred_region
      %25 = vsyncadd [#allocation7], 0
      %s26 = sshll.u32 %s1, 4
      %s27 = int_to_ptr.hbm [resolvable:$true] %s26
      %s28 = sshll.u32 [#allocation6], 4
      %s29 = int_to_ptr.vmem [resolvable:$true] %s28
      %34 = dma.hbm_to_vmem [thread:$0]  %s27, 512, %s29, [#allocation7], 128, 128, 8
    $region9: #{tpu_custom_call.1} parent=1 // pred_fallthru
      _
    // Predicated region
    $region10: #{tpu_custom_call.1} parent=1 // pred_check
      _
    $region11: #{tpu_custom_call.1} parent=1 // pred_check_branch
      %36 = sbr.rel (0) target = $region13
    $region12: #{tpu_custom_call.1} parent=1 // pred_region
      _
    $region13: #{tpu_custom_call.1} parent=1 // pred_fallthru
      _
    // Predicated region
    $region14: #{tpu_custom_call.1} parent=1 // pred_check
      _
    $region15: #{tpu_custom_call.1} parent=1 // pred_check_branch
      %38 = sbr.rel (0) target = $region17
    $region16: #{tpu_custom_call.1} parent=1 // pred_region
      %40 = dma.done [#allocation4], 32
    $region17: #{tpu_custom_call.1} parent=1 // pred_fallthru
      _
    // Predicated region
    $region18: #{tpu_custom_call.1} parent=1 // pred_check
      _
    $region19: #{tpu_custom_call.1} parent=1 // pred_check_branch
      %42 = sbr.rel (0) target = $region21
    $region20: #{tpu_custom_call.1} parent=1 // pred_region
      %44 = dma.done [#allocation7], 512
    $region21: #{tpu_custom_call.1} parent=1 // pred_fallthru
      _
    %p45 = scmp.eq.s32.totalorder 0, 0
    // Predicated region
    $region22: #{tpu_custom_call.1} parent=1 // pred_check
      %p46 = pneg %p45
    $region23: #{tpu_custom_call.1} parent=1 // pred_check_branch
      %48 = sbr.rel (%p46) target = $region25
    $region24: #{tpu_custom_call.1} parent=1 // pred_region
      %v49 = vld [vmem:[#allocation3] sm:$0x3]
      %v50 = vld [vmem:[#allocation6] sm:$0xff]
      %v51 = vld [vmem:[#allocation6 + $0x8] sm:$0xff]
      %v52 = vld [vmem:[#allocation6 + $0x10] sm:$0xff]
      %v53 = vld [vmem:[#allocation6 + $0x18] sm:$0xff]
      %v54 = vld [vmem:[%s2] sm:$0x1]
      %v56 = vperm.slane %v54, 0
      %vm58 = vcmask 261120
      %v60 = vsel %vm58, %v49, 0
      %62 = vmatpush.msra.mxu0 0.0
      %63 = vmatpush.msra.mxu0 0.0
      %64 = vmatpush.msra.mxu0 0.0
      %65 = vmatpush.msra.mxu0 0.0
      %66 = vmatpush.msra.mxu0 0.0
      %67 = vmatpush.msra.mxu0 0.0
      %68 = vmatpush.msra.mxu0 0.0
      %69 = vmatpush.msra.mxu0 0.0
      %70 = vmatpush.msra.mxu0 0.0
      %71 = vmatpush.msra.mxu0 0.0
      %72 = vmatpush.msra.mxu0 0.0
      %73 = vmatpush.msra.mxu0 0.0
      %74 = vmatpush.msra.mxu0 %v53
      %75 = vmatpush.msra.mxu0 %v52
      %76 = vmatpush.msra.mxu0 %v51
      %77 = vmatpush.msra.mxu0 %v50
      %78 = vmatmul.f32.gmra.mxu0 %v60
      %v79 = vpop.f32.mrf.mxu0
      %v80 = vadd.f32 %v56, %v79
      %81 = vdwg.mxu0
      %vm82 = vcmask 254976
      %83 = vst.msk [vmem:[#allocation2] sm:$0x3] %vm82, %v80
    $region25: #{tpu_custom_call.1} parent=1 // pred_fallthru
      _
    %v84 = vld [vmem:[#allocation2] sm:$0x3]
    %v86 = vrot.slane %v84, 1
    %v87 = vperm.slane %v84, 0
    %v88 = vperm.slane %v86, 0
    %vm91 = vcmask 261120
    %92 = vst.msk [vmem:[#allocation8] sm:$0xff] %vm91, %v87
    %93 = vst.msk [vmem:[#allocation8 + $0x8] sm:$0xff] %vm91, %v88
    // Predicated region
    $region26: #{tpu_custom_call.1} parent=1 // pred_check
      _
    $region27: #{tpu_custom_call.1} parent=1 // pred_check_branch
      %95 = sbr.rel (0) target = $region29
    $region28: #{tpu_custom_call.1} parent=1 // pred_region
      %97 = vsyncadd [#allocation5], 0
      %s98 = sshll.u32 [#allocation8], 4
      %s99 = int_to_ptr.vmem [resolvable:$true] %s98
      %s100 = sshll.u32 %s3, 4
      %s101 = int_to_ptr.hbm [resolvable:$true] %s100
      %106 = dma.vmem_to_hbm [thread:$0]  %s99, 256, %s101, [#allocation5], 128, 128, 8
    $region29: #{tpu_custom_call.1} parent=1 // pred_fallthru
      _
    // Predicated region
    $region30: #{tpu_custom_call.1} parent=1 // pred_check
      _
    $region31: #{tpu_custom_call.1} parent=1 // pred_check_branch
      %108 = sbr.rel (0) target = $region33
    $region32: #{tpu_custom_call.1} parent=1 // pred_region
      %110 = dma.done [#allocation5], 256
    $region33: #{tpu_custom_call.1} parent=1 // pred_fallthru
      _
    %111 = vsyncpa [#allocation4], 1
    %112 = vsyncpa [#allocation7], 1
    %113 = vsyncpa [#allocation5], 1

</llo_original>
